<compile_context>
chip_gen: v6e
topology: v6e:2x2x1
jax: 0.10.0
libtpu: 0.0.40
codegen_flags: <defaults>
</compile_context>

<pallas_src>
import functools

import jax
import jax.numpy as jnp
from jax import lax
from jax.experimental import pallas as pl
from jax.experimental.pallas import tpu as pltpu


def _linear_act_kernel(x_ref, w_ref, b_ref, o_ref):
    # x: (TN, K), w: (M, K) resident across the grid, b: (1, M)
    h = lax.dot_general(
        x_ref[...], w_ref[...],
        dimension_numbers=(((1,), (1,)), ((), ())),   # contract over K
        preferred_element_type=jnp.float32)
    h = h + b_ref[...]                                # (TN, M) + (1, M)
    o_ref[...] = jnp.maximum(h, 0.0).astype(o_ref.dtype)


def _linear_dropout_act_kernel(keep_threshold, inv_keep,
                               x_ref, w_ref, b_ref, rbits_ref, o_ref):
    h = lax.dot_general(
        x_ref[...], w_ref[...],
        dimension_numbers=(((1,), (1,)), ((), ())),
        preferred_element_type=jnp.float32)
    h = h + b_ref[...]
    # Inverted-scaling dropout via a raw uint32 threshold compare (cheap VPU).
    keep = rbits_ref[...] < jnp.uint32(keep_threshold)
    h = jnp.where(keep, h * inv_keep, 0.0)
    o_ref[...] = jnp.maximum(h, 0.0).astype(o_ref.dtype)


def linear_forward(x, weight, bias, *, dropout_p=0.0, training=False,
                   rng_key=None, block_n=512):
    """x: (N, K) f32; weight: (M, K) f32 (PyTorch layout); bias: (M,) f32."""
    N, K = x.shape
    M, Kw = weight.shape
    assert K == Kw
    b2 = bias.reshape(1, M)

    # Row tiling: single full-extent tile for small N, else TN-row tiles.
    # TODO(synk): for bf16-capable models, cast x/weight to bf16 here to get
    # the native-MXU path and halve DMA bytes (keep f32 accumulation).
    tn = N if N <= block_n else block_n
    n_pad = pl.cdiv(N, tn) * tn
    if n_pad != N:
        x = jnp.pad(x, ((0, n_pad - N), (0, 0)))
    grid = (n_pad // tn,)

    x_spec = pl.BlockSpec((tn, K), lambda i: (i, 0))
    w_spec = pl.BlockSpec((M, K), lambda i: (0, 0))   # resident in VMEM
    b_spec = pl.BlockSpec((1, M), lambda i: (0, 0))   # resident in VMEM
    o_spec = pl.BlockSpec((tn, M), lambda i: (i, 0))

    use_dropout = bool(training) and float(dropout_p) > 0.0
    if use_dropout:
        keep_prob = 1.0 - float(dropout_p)
        threshold = min(int(round(keep_prob * (1 << 32))), (1 << 32) - 1)
        if rng_key is None:
            rng_key = jax.random.PRNGKey(0)
        rbits = jax.random.bits(rng_key, (n_pad, M), dtype=jnp.uint32)
        kernel = functools.partial(
            _linear_dropout_act_kernel, threshold, 1.0 / keep_prob)
        in_specs = [x_spec, w_spec, b_spec,
                    pl.BlockSpec((tn, M), lambda i: (i, 0))]
        args = (x, weight, b2, rbits)
    else:
        kernel = _linear_act_kernel
        in_specs = [x_spec, w_spec, b_spec]
        args = (x, weight, b2)

    out = pl.pallas_call(
        kernel,
        out_shape=jax.ShapeDtypeStruct((n_pad, M), x.dtype),
        grid_spec=pltpu.PrefetchScalarGridSpec(
            num_scalar_prefetch=0,
            grid=grid,
            in_specs=in_specs,
            out_specs=o_spec),
        compiler_params=pltpu.CompilerParams(
            dimension_semantics=("parallel",)),
    )(*args)
    return out[:N] if n_pad != N else out


if __name__ == "__main__":
    # Module config: Linear(in_features=32, out_features=128, dropout=0.1,
    #                       act=ReLU, use_bias=True)
    in_features, out_features = 32, 128
    dropout_p = 0.1
    N = 256          # rows (graph nodes); block_n=128 -> grid=(2,)

    key = jax.random.PRNGKey(0)
    kx, kw, kb, kd = jax.random.split(key, 4)

    # Deterministic PyTorch-style init: U(-1/sqrt(in), 1/sqrt(in))
    bound = 1.0 / (in_features ** 0.5)
    x = jax.random.normal(kx, (N, in_features), dtype=jnp.float32)
    weight = jax.random.uniform(kw, (out_features, in_features),
                                minval=-bound, maxval=bound, dtype=jnp.float32)
    bias = jax.random.uniform(kb, (out_features,),
                              minval=-bound, maxval=bound, dtype=jnp.float32)

    # --- eval mode (dropout = identity): check against pure-JAX reference --
    out_eval = jax.block_until_ready(
        linear_forward(x, weight, bias, dropout_p=dropout_p, training=False,
                       block_n=128))
    ref_eval = jnp.maximum(x @ weight.T + bias, 0.0)
    assert out_eval.shape == (N, out_features)
    assert jnp.allclose(out_eval, ref_eval, atol=1e-5, rtol=1e-5), "eval mismatch"

    # --- training mode (dropout active, inverted scaling) -------------------
    out_train = jax.block_until_ready(
        linear_forward(x, weight, bias, dropout_p=dropout_p, training=True,
                       rng_key=kd, block_n=128))
    keep_prob = 1.0 - dropout_p
    thr = jnp.uint32(min(int(round(keep_prob * (1 << 32))), (1 << 32) - 1))
    rbits_ref = jax.random.bits(kd, (N, out_features), dtype=jnp.uint32)
    h_ref = x @ weight.T + bias
    ref_train = jnp.maximum(
        jnp.where(rbits_ref < thr, h_ref / keep_prob, 0.0), 0.0)
    assert out_train.shape == (N, out_features)
    assert jnp.allclose(out_train, ref_train, atol=1e-4, rtol=1e-4), "train mismatch"
    assert bool(jnp.all(jnp.isfinite(out_train)))

    print("KERNEL_OK")
</pallas_src>

<mosaic_0001>
module attributes {stable_mosaic.version = 11 : i64} {
  func.func @_linear_act_kernel(%arg0: i32, %arg1: memref<128x32xf32, #tpu.memory_space<vmem>>, %arg2: memref<128x32xf32, #tpu.memory_space<vmem>>, %arg3: memref<1x128xf32, #tpu.memory_space<vmem>>, %arg4: memref<128x128xf32, #tpu.memory_space<vmem>>) attributes {dimension_semantics = [#tpu.dimension_semantics<parallel>], iteration_bounds = array<i64: 2>, scalar_prefetch = 0 : i64, scratch_operands = 0 : i64, tpu.core_type = #tpu.core_type<tc>, window_params = [{transform_indices = @transform_0, window_bounds = array<i64: 128, 32>}, {pipeline_mode = #tpu.pipeline_mode<synchronous>, transform_indices = @transform_1, window_bounds = array<i64: 128, 32>}, {pipeline_mode = #tpu.pipeline_mode<synchronous>, transform_indices = @transform_2, window_bounds = array<i64: 1, 128>}, {transform_indices = @transform_3, window_bounds = array<i64: 128, 128>}]} {
    %c0 = arith.constant 0 : index
    %c0_0 = arith.constant 0 : index
    %0 = vector.load %arg1[%c0, %c0_0] : memref<128x32xf32, #tpu.memory_space<vmem>>, vector<128x32xf32>
    %c0_1 = arith.constant 0 : index
    %c0_2 = arith.constant 0 : index
    %1 = vector.load %arg2[%c0_1, %c0_2] : memref<128x32xf32, #tpu.memory_space<vmem>>, vector<128x32xf32>
    %cst = arith.constant dense<0.000000e+00> : vector<128x128xf32>
    %2 = tpu.matmul %0, %1, %cst {dimension_numbers = #tpu.dot_dimension_numbers<[1], [1], [0], [0], [0, 0, 1, 0], [], []>} : vector<128x32xf32>, vector<128x32xf32>, vector<128x128xf32> -> vector<128x128xf32>
    %c0_3 = arith.constant 0 : index
    %c0_4 = arith.constant 0 : index
    %3 = vector.load %arg3[%c0_3, %c0_4] : memref<1x128xf32, #tpu.memory_space<vmem>>, vector<1x128xf32>
    %4 = vector.broadcast %3 : vector<1x128xf32> to vector<128x128xf32>
    %5 = arith.addf %2, %4 : vector<128x128xf32>
    %cst_5 = arith.constant 0.000000e+00 : f32
    %6 = vector.broadcast %cst_5 : f32 to vector<128x128xf32>
    %7 = arith.maximumf %5, %6 : vector<128x128xf32>
    %c0_6 = arith.constant 0 : index
    %c0_7 = arith.constant 0 : index
    %8 = vector.load %arg4[%c0_6, %c0_7] : memref<128x128xf32, #tpu.memory_space<vmem>>, vector<128x128xf32>
    tpu.vector_store %arg4[%c0_6, %c0_7], %7 {strides = array<i32>} : memref<128x128xf32, #tpu.memory_space<vmem>>, vector<128x128xf32>,
    return
  }
  func.func @transform_0(%arg0: i32) -> (i32, i32) {
    %c0_i32 = arith.constant 0 : i32
    %c0_i32_0 = arith.constant 0 : i32
    return %arg0, %c0_i32 : i32, i32
  }
  func.func @transform_1(%arg0: i32) -> (i32, i32) {
    %c0_i32 = arith.constant 0 : i32
    %c0_i32_0 = arith.constant 0 : i32
    %c0_i32_1 = arith.constant 0 : i32
    return %c0_i32, %c0_i32_0 : i32, i32
  }
  func.func @transform_2(%arg0: i32) -> (i32, i32) {
    %c0_i32 = arith.constant 0 : i32
    %c0_i32_0 = arith.constant 0 : i32
    %c0_i32_1 = arith.constant 0 : i32
    return %c0_i32, %c0_i32_0 : i32, i32
  }
  func.func @transform_3(%arg0: i32) -> (i32, i32) {
    %c0_i32 = arith.constant 0 : i32
    %c0_i32_0 = arith.constant 0 : i32
    return %arg0, %c0_i32 : i32, i32
  }
}

</mosaic_0001>

<llo_original>
// kernel: tpu_custom_call.1
$region0: #{tpu_custom_call.1}
  #allocation0 [shape = 'u32[]', space=smem, size = 0x4, offset = 0x4, fixed_abs, tag = 'smem constant byte address 0x4 - core index']
  #allocation1 [shape = 'u32[144,128]{1,0:T(1,128)}', space=vmem, size = 0x12000, scoped, tag = 'internal scratch']
  %s0 = inlined_call_operand.vmem [shape: f32[256,32], index: 0, kind: input, shape index: {}]
  %s1 = inlined_call_operand.vmem [shape: f32[128,32], index: 1, kind: input, shape index: {}]
  %s2 = inlined_call_operand.vmem [shape: f32[1,128], index: 2, kind: input, shape index: {}]
  %s3 = inlined_call_operand.hbm [shape: f32[256,128], index: 3, kind: output, shape index: {}]
  %s4 = sld [smem:[#allocation0]]
  $region45: #{tpu_custom_call.1} parent=0
    _
  %s6 = ssub.s32 1, %s4
  %s7 = scalar_select 0, %s6, %s4
  $region1: #{tpu_custom_call.1} parent=0
    #allocation2 [shape = 'u8[131072]{0}', space=vmem, size = 0x20000, scoped, tag = 'output window, operand 0']
    #allocation3 [shape = 's32[2]{0}', space=sflag, size = 0x8, scoped, tag = 'scoped memory for tpu_custom_call.1']
    %8 = vsyncpa [#allocation3], 0
    %s9 = scalar_lea.sflag [#allocation3], 1
    %10 = vsyncpa %s9, 0
    loop: start=0, step=1, limit=4
    $region2: #{tpu_custom_call.1} parent=1 // loop_pre_header
      _
    $region3: #{tpu_custom_call.1} parent=1 // loop_header
      %s12 = sphi 0, %s16
      %p13 = scmp.ge.s32.totalorder %s12, 4
      %s22 = sphi 0, %s24
      %s25 = sphi 0, %s22
      %s26 = sphi 0, %s25
      %s42 = sphi 0, %s26
      %s46 = sphi 0, %s46
      %s48 = sphi 0, %s46
      %s49 = sphi 0, %s48
      %s63 = sphi 0, %s49
      %s67 = sphi 0, %s67
      %s69 = sphi 0, %s67
      %s70 = sphi 0, %s69
      %s84 = sphi 0, %s70
      %s90 = sphi 0, %s92
      %s93 = sphi 0, %s90
      %s94 = sphi 0, %s93
      %s110 = sphi 0, %s94
    $region4: #{tpu_custom_call.1} parent=1 // loop_header_branch
      %15 = sbr.rel (%p13) target = $region8
    $region5: #{tpu_custom_call.1} parent=1 // loop_body
      %s17 = ssub.s32 %s12, 1
      %s18 = ssub.s32 %s12, 2
      %s19 = sadd.s32 %s12, 1
      %s20 = ssub.s32 %s12, %s19
      %p21 = scmp.eq.s32.totalorder %s20, 0
      %s23 = sadd.s32 %s22, 1
      %s24 = scalar_select %p21, %s22, %s23
      %p27 = pneg %p21
      %p28 = scmp.eq.s32.totalorder %s12, 1
      %p29 = por %p27, %p28
      %p30 = scmp.ne.s32.totalorder %s22, %s25
      %p31 = scmp.eq.s32.totalorder %s12, 0
      %p32 = por %p30, %p31
      %p33 = scmp.ne.s32.totalorder %s22, %s25
      %p34 = scmp.eq.s32.totalorder %s17, 1
      %p35 = por %p33, %p34
      %p36 = scmp.ne.s32.totalorder %s25, %s26
      %p37 = scmp.eq.s32.totalorder %s17, 0
      %p38 = por %p36, %p37
      %p39 = scmp.ne.s32.totalorder %s25, %s26
      %p40 = scmp.eq.s32.totalorder %s18, 1
      %p41 = por %p39, %p40
      %p43 = scmp.ne.s32.totalorder %s26, %s42
      %p44 = scmp.eq.s32.totalorder %s18, 0
      %p45 = por %p43, %p44
      %s47 = sadd.s32 %s46, 1
      %p50 = scmp.eq.s32.totalorder %s12, 1
      %p51 = scmp.ne.s32.totalorder %s46, %s48
      %p52 = scmp.eq.s32.totalorder %s12, 0
      %p53 = por %p51, %p52
      %p54 = scmp.ne.s32.totalorder %s46, %s48
      %p55 = scmp.eq.s32.totalorder %s17, 1
      %p56 = por %p54, %p55
      %p57 = scmp.ne.s32.totalorder %s48, %s49
      %p58 = scmp.eq.s32.totalorder %s17, 0
      %p59 = por %p57, %p58
      %p60 = scmp.ne.s32.totalorder %s48, %s49
      %p61 = scmp.eq.s32.totalorder %s18, 1
      %p62 = por %p60, %p61
      %p64 = scmp.ne.s32.totalorder %s49, %s63
      %p65 = scmp.eq.s32.totalorder %s18, 0
      %p66 = por %p64, %p65
      %s68 = sadd.s32 %s67, 1
      %p71 = scmp.eq.s32.totalorder %s12, 1
      %p72 = scmp.ne.s32.totalorder %s67, %s69
      %p73 = scmp.eq.s32.totalorder %s12, 0
      %p74 = por %p72, %p73
      %p75 = scmp.ne.s32.totalorder %s67, %s69
      %p76 = scmp.eq.s32.totalorder %s17, 1
      %p77 = por %p75, %p76
      %p78 = scmp.ne.s32.totalorder %s69, %s70
      %p79 = scmp.eq.s32.totalorder %s17, 0
      %p80 = por %p78, %p79
      %p81 = scmp.ne.s32.totalorder %s69, %s70
      %p82 = scmp.eq.s32.totalorder %s18, 1
      %p83 = por %p81, %p82
      %p85 = scmp.ne.s32.totalorder %s70, %s84
      %p86 = scmp.eq.s32.totalorder %s18, 0
      %p87 = por %p85, %p86
      %s88 = ssub.s32 %s12, %s19
      %p89 = scmp.eq.s32.totalorder %s88, 0
      %s91 = sadd.s32 %s90, 1
      %s92 = scalar_select %p89, %s90, %s91
      %p95 = pneg %p89
      %p96 = scmp.eq.s32.totalorder %s12, 1
      %p97 = por %p95, %p96
      %p98 = scmp.ne.s32.totalorder %s90, %s93
      %p99 = scmp.eq.s32.totalorder %s12, 0
      %p100 = por %p98, %p99
      %p101 = scmp.ne.s32.totalorder %s90, %s93
      %p102 = scmp.eq.s32.totalorder %s17, 1
      %p103 = por %p101, %p102
      %p104 = scmp.ne.s32.totalorder %s93, %s94
      %p105 = scmp.eq.s32.totalorder %s17, 0
      %p106 = por %p104, %p105
      %p107 = scmp.ne.s32.totalorder %s93, %s94
      %p108 = scmp.eq.s32.totalorder %s18, 1
      %p109 = por %p107, %p108
      %p111 = scmp.ne.s32.totalorder %s94, %s110
      %p112 = scmp.eq.s32.totalorder %s18, 0
      %p113 = por %p111, %p112
      %p114 = scmp.le.s32.totalorder 1, %s12
      %p115 = scmp.lt.s32.totalorder %s12, 3
      %p116 = pnand %p114, %p115
      %p117 = pneg %p116
      // Predicated region
      $region9: #{tpu_custom_call.1} parent=5 // pred_check
        _
      $region10: #{tpu_custom_call.1} parent=5 // pred_check_branch
        %119 = sbr.rel (%p116) target = $region12
      $region11: #{tpu_custom_call.1} parent=5 // pred_region
        %s120 = ssub.s32 %s12, 1
        // Predicated region
        $region13: #{tpu_custom_call.1} parent=11 // pred_check
          %p121 = pneg %p59
        $region14: #{tpu_custom_call.1} parent=11 // pred_check_branch
          %123 = sbr.rel (%p121) target = $region16
        $region15: #{tpu_custom_call.1} parent=11 // pred_region
          _
        $region16: #{tpu_custom_call.1} parent=11 // pred_fallthru
          _
        // Predicated region
        $region17: #{tpu_custom_call.1} parent=11 // pred_check
          %p124 = pneg %p80
        $region18: #{tpu_custom_call.1} parent=11 // pred_check_branch
          %126 = sbr.rel (%p124) target = $region20
        $region19: #{tpu_custom_call.1} parent=11 // pred_region
          _
        $region20: #{tpu_custom_call.1} parent=11 // pred_fallthru
          _
      $region12: #{tpu_custom_call.1} parent=5 // pred_fallthru
        _
      %p127 = scmp.lt.s32.totalorder %s12, 2
      // Predicated region
      $region21: #{tpu_custom_call.1} parent=5 // pred_check
        %p128 = pneg %p127
      $region22: #{tpu_custom_call.1} parent=5 // pred_check_branch
        %130 = sbr.rel (%p128) target = $region24
      $region23: #{tpu_custom_call.1} parent=5 // pred_region
        // Predicated region
        $region25: #{tpu_custom_call.1} parent=23 // pred_check
          %p131 = pneg %p32
        $region26: #{tpu_custom_call.1} parent=23 // pred_check_branch
          %133 = sbr.rel (%p131) target = $region28
        $region27: #{tpu_custom_call.1} parent=23 // pred_region
          %s134 = smul.u32 16, %s12
          %p135 = scmp.lt.s32.totalorder %s134, 31
          %s136 = scalar_select %p135, %s134, 31
          %s137 = smul.addr %s136, 8
          %s138 = scalar_lea.vmem %s0, %s137
          %s139 = smul.u32 16, %s12
        $region28: #{tpu_custom_call.1} parent=23 // pred_fallthru
          _
      $region24: #{tpu_custom_call.1} parent=5 // pred_fallthru
        _
      %p140 = scmp.le.s32.totalorder 1, %s12
      %p141 = scmp.lt.s32.totalorder %s12, 3
      %p142 = pnand %p140, %p141
      %p143 = pneg %p142
      // Predicated region
      $region29: #{tpu_custom_call.1} parent=5 // pred_check
        _
      $region30: #{tpu_custom_call.1} parent=5 // pred_check_branch
        %145 = sbr.rel (%p142) target = $region32
      $region31: #{tpu_custom_call.1} parent=5 // pred_region
        %s146 = ssub.s32 %s12, 1
        %s147 = smul.u32 16, %s17
        %p148 = scmp.lt.s32.totalorder %s147, 31
        %s149 = scalar_select %p148, %s147, 31
        %s150 = smul.addr %s149, 8
        %s151 = scalar_lea.vmem %s0, %s150
        %p152 = pneg %p38
        %p153 = pneg %p35
        %p154 = pneg %p59
        %p155 = pneg %p56
        %p156 = pneg %p80
        %p157 = pneg %p77
        %p158 = pneg %p106
        %p159 = pneg %p103
        %s160 = sand.u32 %s93, 1
        %s161 = scalar_lea.sflag [#allocation3], %s160
        %s162 = sand.u32 %s93, 1
        %s163 = smul.addr %s162, 128
        %s164 = scalar_lea.vmem [#allocation2], %s163
        %s165 = smul.u32 16, %s17
        %p166 = scmp.lt.s32.totalorder %s165, 31
        %s167 = scalar_select %p166, %s165, 31
        %s168 = smul.addr %s167, 8
        %s169 = scalar_lea.vmem %s0, %s168
        %s170 = smul.u32 16, %s17
        %s171 = smul.u32 16, %s17
        %v172 = vld [vmem:[%s169] sm:$0xff]
        %v173 = vld [vmem:[%s169 + $0x8] sm:$0xff]
        %v174 = vld [vmem:[%s169 + $0x10] sm:$0xff]
        %v175 = vld [vmem:[%s169 + $0x18] sm:$0xff]
        %v176 = vld [vmem:[%s169 + $0x20] sm:$0xff]
        %v177 = vld [vmem:[%s169 + $0x28] sm:$0xff]
        %v178 = vld [vmem:[%s169 + $0x30] sm:$0xff]
        %v179 = vld [vmem:[%s169 + $0x38] sm:$0xff]
        %v180 = vld [vmem:[%s169 + $0x40] sm:$0xff]
        %v181 = vld [vmem:[%s169 + $0x48] sm:$0xff]
        %v182 = vld [vmem:[%s169 + $0x50] sm:$0xff]
        %v183 = vld [vmem:[%s169 + $0x58] sm:$0xff]
        %v184 = vld [vmem:[%s169 + $0x60] sm:$0xff]
        %v185 = vld [vmem:[%s169 + $0x68] sm:$0xff]
        %v186 = vld [vmem:[%s169 + $0x70] sm:$0xff]
        %v187 = vld [vmem:[%s169 + $0x78] sm:$0xff]
        %v188 = vld [vmem:[%s1] sm:$0xff]
        %v189 = vld [vmem:[%s1 + $0x8] sm:$0xff]
        %v190 = vld [vmem:[%s1 + $0x10] sm:$0xff]
        %v191 = vld [vmem:[%s1 + $0x18] sm:$0xff]
        %v192 = vld [vmem:[%s1 + $0x20] sm:$0xff]
        %v193 = vld [vmem:[%s1 + $0x28] sm:$0xff]
        %v194 = vld [vmem:[%s1 + $0x30] sm:$0xff]
        %v195 = vld [vmem:[%s1 + $0x38] sm:$0xff]
        %v196 = vld [vmem:[%s1 + $0x40] sm:$0xff]
        %v197 = vld [vmem:[%s1 + $0x48] sm:$0xff]
        %v198 = vld [vmem:[%s1 + $0x50] sm:$0xff]
        %v199 = vld [vmem:[%s1 + $0x58] sm:$0xff]
        %v200 = vld [vmem:[%s1 + $0x60] sm:$0xff]
        %v201 = vld [vmem:[%s1 + $0x68] sm:$0xff]
        %v202 = vld [vmem:[%s1 + $0x70] sm:$0xff]
        %v203 = vld [vmem:[%s1 + $0x78] sm:$0xff]
        %v204 = vld [vmem:[%s2] sm:$0x1]
        %v206 = vlaneseq
        %v207 = vshrl.u32 %v206, 7
        %v208 = vsub.s32 0, %v207
        %v209 = vrot.slane %v204, %v208
        %vm211 = vcmask 261120
        %v213 = vsel %vm211, %v172, 0
        %v216 = vsel %vm211, %v173, 0
        %v219 = vsel %vm211, %v174, 0
        %v222 = vsel %vm211, %v175, 0
        %v225 = vsel %vm211, %v176, 0
        %v228 = vsel %vm211, %v177, 0
        %v231 = vsel %vm211, %v178, 0
        %v234 = vsel %vm211, %v179, 0
        %v237 = vsel %vm211, %v180, 0
        %v240 = vsel %vm211, %v181, 0
        %v243 = vsel %vm211, %v182, 0
        %v246 = vsel %vm211, %v183, 0
        %v249 = vsel %vm211, %v184, 0
        %v252 = vsel %vm211, %v185, 0
        %v255 = vsel %vm211, %v186, 0
        %v258 = vsel %vm211, %v187, 0
        %v261 = vsel %vm211, %v188, 0
        %v264 = vsel %vm211, %v189, 0
        %v267 = vsel %vm211, %v190, 0
        %v270 = vsel %vm211, %v191, 0
        %v273 = vsel %vm211, %v192, 0
        %v276 = vsel %vm211, %v193, 0
        %v279 = vsel %vm211, %v194, 0
        %v282 = vsel %vm211, %v195, 0
        %v285 = vsel %vm211, %v196, 0
        %v288 = vsel %vm211, %v197, 0
        %v291 = vsel %vm211, %v198, 0
        %v294 = vsel %vm211, %v199, 0
        %v297 = vsel %vm211, %v200, 0
        %v300 = vsel %vm211, %v201, 0
        %v303 = vsel %vm211, %v202, 0
        %v306 = vsel %vm211, %v203, 0
        %308 = vmatprep.subr.mxu0 0.0
        %309 = vmatpush1.xpose.msra.mxu0 %v306
        %310 = vmatprep.subr.mxu0 0.0
        %311 = vmatpush1.xpose.msra.mxu0 %v303
        %312 = vmatprep.subr.mxu0 0.0
        %313 = vmatpush1.xpose.msra.mxu0 %v300
        %314 = vmatprep.subr.mxu0 0.0
        %315 = vmatpush1.xpose.msra.mxu0 %v297
        %316 = vmatprep.subr.mxu0 0.0
        %317 = vmatpush1.xpose.msra.mxu0 %v294
        %318 = vmatprep.subr.mxu0 0.0
        %319 = vmatpush1.xpose.msra.mxu0 %v291
        %320 = vmatprep.subr.mxu0 0.0
        %321 = vmatpush1.xpose.msra.mxu0 %v288
        %322 = vmatprep.subr.mxu0 0.0
        %323 = vmatpush1.xpose.msra.mxu0 %v285
        %324 = vmatprep.subr.mxu0 0.0
        %325 = vmatpush1.xpose.msra.mxu0 %v282
        %326 = vmatprep.subr.mxu0 0.0
        %327 = vmatpush1.xpose.msra.mxu0 %v279
        %328 = vmatprep.subr.mxu0 0.0
        %329 = vmatpush1.xpose.msra.mxu0 %v276
        %330 = vmatprep.subr.mxu0 0.0
        %331 = vmatpush1.xpose.msra.mxu0 %v273
        %332 = vmatprep.subr.mxu0 0.0
        %333 = vmatpush1.xpose.msra.mxu0 %v270
        %334 = vmatprep.subr.mxu0 0.0
        %335 = vmatpush1.xpose.msra.mxu0 %v267
        %336 = vmatprep.subr.mxu0 0.0
        %337 = vmatpush1.xpose.msra.mxu0 %v264
        %338 = vmatprep.subr.mxu0 0.0
        %339 = vmatpush1.xpose.msra.mxu0 %v261
        %340 = vmatprep.subr.mxu0 0.0
        %341 = vmatpush2.xpose.msra.mxu0 0.0
        %342 = vmatprep.subr.mxu0 0.0
        %343 = vmatpush2.xpose.msra.mxu0 0.0
        %344 = vmatprep.subr.mxu0 0.0
        %345 = vmatpush2.xpose.msra.mxu0 0.0
        %346 = vmatprep.subr.mxu0 0.0
        %347 = vmatpush2.xpose.msra.mxu0 0.0
        %348 = vmatprep.subr.mxu0 0.0
        %349 = vmatpush2.xpose.msra.mxu0 0.0
        %350 = vmatprep.subr.mxu0 0.0
        %351 = vmatpush2.xpose.msra.mxu0 0.0
        %352 = vmatprep.subr.mxu0 0.0
        %353 = vmatpush2.xpose.msra.mxu0 0.0
        %354 = vmatprep.subr.mxu0 0.0
        %355 = vmatpush2.xpose.msra.mxu0 0.0
        %356 = vmatprep.subr.mxu0 0.0
        %357 = vmatpush2.xpose.msra.mxu0 0.0
        %358 = vmatprep.subr.mxu0 0.0
        %359 = vmatpush2.xpose.msra.mxu0 0.0
        %360 = vmatprep.subr.mxu0 0.0
        %361 = vmatpush2.xpose.msra.mxu0 0.0
        %362 = vmatprep.subr.mxu0 0.0
        %363 = vmatpush2.xpose.msra.mxu0 0.0
        %364 = vmatprep.subr.mxu0 0.0
        %365 = vmatpush2.xpose.msra.mxu0 0.0
        %366 = vmatprep.subr.mxu0 0.0
        %367 = vmatpush2.xpose.msra.mxu0 0.0
        %368 = vmatprep.subr.mxu0 0.0
        %369 = vmatpush2.xpose.msra.mxu0 0.0
        %370 = vmatprep.subr.mxu0 0.0
        %371 = vmatpush2.xpose.msra.mxu0 0.0
        %372 = vmatprep.mubr.f32.mxu0 0.0
        %373 = vmatmul.mubr.f32.gmra.mxu0 %v213
        %v374 = vpop.f32.mrf.mxu0
        %v375 = vadd.f32 %v209, %v374
        %v376 = vpop.f32.mrf.mxu0
        %377 = vmatprep.mubr.f32.mxu0 0.0
        %378 = vmatmul.mubr.f32.gmra.mxu0 %v216
        %v379 = vpop.f32.mrf.mxu0
        %v380 = vadd.f32 %v209, %v379
        %v381 = vpop.f32.mrf.mxu0
        %382 = vmatprep.mubr.f32.mxu0 0.0
        %383 = vmatmul.mubr.f32.gmra.mxu0 %v219
        %v384 = vpop.f32.mrf.mxu0
        %v385 = vadd.f32 %v209, %v384
        %v386 = vpop.f32.mrf.mxu0
        %387 = vmatprep.mubr.f32.mxu0 0.0
        %388 = vmatmul.mubr.f32.gmra.mxu0 %v222
        %v389 = vpop.f32.mrf.mxu0
        %v390 = vadd.f32 %v209, %v389
        %v391 = vpop.f32.mrf.mxu0
        %392 = vmatprep.mubr.f32.mxu0 0.0
        %393 = vmatmul.mubr.f32.gmra.mxu0 %v225
        %v394 = vpop.f32.mrf.mxu0
        %v395 = vadd.f32 %v209, %v394
        %v396 = vpop.f32.mrf.mxu0
        %397 = vmatprep.mubr.f32.mxu0 0.0
        %398 = vmatmul.mubr.f32.gmra.mxu0 %v228
        %v399 = vpop.f32.mrf.mxu0
        %v400 = vadd.f32 %v209, %v399
        %v401 = vpop.f32.mrf.mxu0
        %402 = vmatprep.mubr.f32.mxu0 0.0
        %403 = vmatmul.mubr.f32.gmra.mxu0 %v231
        %v404 = vpop.f32.mrf.mxu0
        %v405 = vadd.f32 %v209, %v404
        %v406 = vpop.f32.mrf.mxu0
        %407 = vmatprep.mubr.f32.mxu0 0.0
        %408 = vmatmul.mubr.f32.gmra.mxu0 %v234
        %v409 = vpop.f32.mrf.mxu0
        %v410 = vadd.f32 %v209, %v409
        %v411 = vpop.f32.mrf.mxu0
        %412 = vmatprep.mubr.f32.mxu0 0.0
        %413 = vmatmul.mubr.f32.gmra.mxu0 %v237
        %v414 = vpop.f32.mrf.mxu0
        %v415 = vadd.f32 %v209, %v414
        %v416 = vpop.f32.mrf.mxu0
        %417 = vmatprep.mubr.f32.mxu0 0.0
        %418 = vmatmul.mubr.f32.gmra.mxu0 %v240
        %v419 = vpop.f32.mrf.mxu0
        %v420 = vadd.f32 %v209, %v419
        %v421 = vpop.f32.mrf.mxu0
        %422 = vmatprep.mubr.f32.mxu0 0.0
        %423 = vmatmul.mubr.f32.gmra.mxu0 %v243
        %v424 = vpop.f32.mrf.mxu0
        %v425 = vadd.f32 %v209, %v424
        %v426 = vpop.f32.mrf.mxu0
        %427 = vmatprep.mubr.f32.mxu0 0.0
        %428 = vmatmul.mubr.f32.gmra.mxu0 %v246
        %v429 = vpop.f32.mrf.mxu0
        %v430 = vadd.f32 %v209, %v429
        %v431 = vpop.f32.mrf.mxu0
        %432 = vmatprep.mubr.f32.mxu0 0.0
        %433 = vmatmul.mubr.f32.gmra.mxu0 %v249
        %v434 = vpop.f32.mrf.mxu0
        %v435 = vadd.f32 %v209, %v434
        %v436 = vpop.f32.mrf.mxu0
        %437 = vmatprep.mubr.f32.mxu0 0.0
        %438 = vmatmul.mubr.f32.gmra.mxu0 %v252
        %v439 = vpop.f32.mrf.mxu0
        %v440 = vadd.f32 %v209, %v439
        %v441 = vpop.f32.mrf.mxu0
        %442 = vmatprep.mubr.f32.mxu0 0.0
        %443 = vmatmul.mubr.f32.gmra.mxu0 %v255
        %v444 = vpop.f32.mrf.mxu0
        %v445 = vadd.f32 %v209, %v444
        %v446 = vpop.f32.mrf.mxu0
        %447 = vmatprep.mubr.f32.mxu0 0.0
        %448 = vmatmul.mubr.f32.gmra.mxu0 %v258
        %v449 = vpop.f32.mrf.mxu0
        %v450 = vadd.f32 %v209, %v449
        %v451 = vpop.f32.mrf.mxu0
        %452 = vdwg.mxu0
        %v453 = vmax.f32 %v375, 0.0
        %v454 = vmax.f32 %v380, 0.0
        %v455 = vmax.f32 %v385, 0.0
        %v456 = vmax.f32 %v390, 0.0
        %v457 = vmax.f32 %v395, 0.0
        %v458 = vmax.f32 %v400, 0.0
        %v459 = vmax.f32 %v405, 0.0
        %v460 = vmax.f32 %v410, 0.0
        %v461 = vmax.f32 %v415, 0.0
        %v462 = vmax.f32 %v420, 0.0
        %v463 = vmax.f32 %v425, 0.0
        %v464 = vmax.f32 %v430, 0.0
        %v465 = vmax.f32 %v435, 0.0
        %v466 = vmax.f32 %v440, 0.0
        %v467 = vmax.f32 %v445, 0.0
        %v468 = vmax.f32 %v450, 0.0
        %469 = vst [vmem:[%s164] sm:$0xff] %v453
        %470 = vst [vmem:[%s164 + $0x8] sm:$0xff] %v454
        %471 = vst [vmem:[%s164 + $0x10] sm:$0xff] %v455
        %472 = vst [vmem:[%s164 + $0x18] sm:$0xff] %v456
        %473 = vst [vmem:[%s164 + $0x20] sm:$0xff] %v457
        %474 = vst [vmem:[%s164 + $0x28] sm:$0xff] %v458
        %475 = vst [vmem:[%s164 + $0x30] sm:$0xff] %v459
        %476 = vst [vmem:[%s164 + $0x38] sm:$0xff] %v460
        %477 = vst [vmem:[%s164 + $0x40] sm:$0xff] %v461
        %478 = vst [vmem:[%s164 + $0x48] sm:$0xff] %v462
        %479 = vst [vmem:[%s164 + $0x50] sm:$0xff] %v463
        %480 = vst [vmem:[%s164 + $0x58] sm:$0xff] %v464
        %481 = vst [vmem:[%s164 + $0x60] sm:$0xff] %v465
        %482 = vst [vmem:[%s164 + $0x68] sm:$0xff] %v466
        %483 = vst [vmem:[%s164 + $0x70] sm:$0xff] %v467
        %484 = vst [vmem:[%s164 + $0x78] sm:$0xff] %v468
        %s485 = sand.u32 %s93, 1
        %s486 = scalar_lea.sflag [#allocation3], %s485
        %s487 = sand.u32 %s93, 1
        %s488 = smul.addr %s487, 128
        %s489 = scalar_lea.vmem [#allocation2], %s488
        // Predicated region
        $region33: #{tpu_custom_call.1} parent=31 // pred_check
          %p490 = pneg %p103
        $region34: #{tpu_custom_call.1} parent=31 // pred_check_branch
          %492 = sbr.rel (%p490) target = $region36
        $region35: #{tpu_custom_call.1} parent=31 // pred_region
          %s493 = smul.u32 16, %s17
          %s495 = ssub.s32 2048, 2048
          %496 = vsyncadd %s486, %s495
          %s497 = smul.addr %s493, 128
          %s498 = scalar_lea.hbm %s3, %s497
          %s499 = sshll.u32 %s489, 4
          %s500 = int_to_ptr.vmem [resolvable:$true] %s499
          %505 = dma.vmem_to_hbm [thread:$0]  %s500, 2048, %s498, %s486, 128, 128, 8
        $region36: #{tpu_custom_call.1} parent=31 // pred_fallthru
          _
      $region32: #{tpu_custom_call.1} parent=5 // pred_fallthru
        _
      %p506 = scmp.le.s32.totalorder 2, %s12
      // Predicated region
      $region37: #{tpu_custom_call.1} parent=5 // pred_check
        %p507 = pneg %p506
      $region38: #{tpu_custom_call.1} parent=5 // pred_check_branch
        %509 = sbr.rel (%p507) target = $region40
      $region39: #{tpu_custom_call.1} parent=5 // pred_region
        %s510 = ssub.s32 %s12, 2
        // Predicated region
        $region41: #{tpu_custom_call.1} parent=39 // pred_check
          %p511 = pneg %p109
        $region42: #{tpu_custom_call.1} parent=39 // pred_check_branch
          %513 = sbr.rel (%p511) target = $region44
        $region43: #{tpu_custom_call.1} parent=39 // pred_region
          %s514 = sand.u32 %s94, 1
          %s515 = scalar_lea.sflag [#allocation3], %s514
          %s516 = sand.u32 %s94, 1
          %s517 = smul.addr %s516, 128
          %s518 = scalar_lea.vmem [#allocation2], %s517
          %519 = dma.done %s515, 2048
        $region44: #{tpu_custom_call.1} parent=39 // pred_fallthru
          _
      $region40: #{tpu_custom_call.1} parent=5 // pred_fallthru
        _
    $region6: #{tpu_custom_call.1} parent=1 // loop_footer
      %s16 = sadd.s32 1, %s12
    $region7: #{tpu_custom_call.1} parent=1 // loop_footer_branch
      %11 = sbr.rel target = $region3
    $region8: #{tpu_custom_call.1} parent=1 // loop_exit
      _
    %520 = vsyncpa [#allocation3], 1
    %s521 = scalar_lea.sflag [#allocation3], 1
    %522 = vsyncpa %s521, 1

</llo_original>
